<compile_context>
chip_gen: v7x
topology: tpu7x:2x2x1
jax: 0.10.0
libtpu: 0.0.40
codegen_flags: <defaults>
</compile_context>

<pallas_src>
import functools

import jax
import jax.numpy as jnp
from jax import lax
from jax.experimental import pallas as pl
from jax.experimental.pallas import tpu as pltpu

LANES = 128

# Streaming-path tile height: (8192, 128) f32 block = 4 MiB (bf16 = 2 MiB).
# Double-buffered in+out plus the f32 exp temp stays ~24 MiB -> fits every
# generation (incl. v7x 64 MiB physical VMEM) with headroom.
MAX_TILE_ROWS = 8192

# Fast-path threshold on the f32 footprint of the slab (n <= 1M elements).
FAST_PATH_MAX_F32_BYTES = 4 * 1024 * 1024


def _softmax_resident_kernel(x_ref, o_ref, *, n, needs_mask):
    """Single-pass global softmax; the whole slab is resident in VMEM."""
    e = jnp.exp(x_ref[...].astype(jnp.float32))
    if needs_mask:
        # Only the lane-padding tail needs zeroing, and only for the SUM.
        row = lax.broadcasted_iota(jnp.int32, e.shape, 0)
        col = lax.broadcasted_iota(jnp.int32, e.shape, 1)
        valid = (row * LANES + col) < n
        total = jnp.sum(jnp.where(valid, e, 0.0))
    else:
        total = jnp.sum(e)
    # Output is NOT masked: padded positions are sliced off in the wrapper.
    o_ref[...] = (e * (1.0 / total)).astype(o_ref.dtype)


def _partial_sums_kernel(x_ref, ps_ref, *, n_last, needs_mask):
    """Streaming pass A: per-tile (1, 1, 128) partial lane sums of exp(x)."""
    e = jnp.exp(x_ref[...].astype(jnp.float32))
    if needs_mask:
        t = pl.program_id(0)
        nt = pl.num_programs(0)

        @pl.when(t < nt - 1)
        def _full_tile():
            ps_ref[...] = jnp.sum(e, axis=0, keepdims=True)[None]

        @pl.when(t == nt - 1)
        def _last_tile():
            # Mask only the last tile, with LOCAL indices (int32-safe even for
            # multi-billion-element inputs): covers both the lane-pad tail and
            # any out-of-bounds rows of a partial final block.
            row = lax.broadcasted_iota(jnp.int32, e.shape, 0)
            col = lax.broadcasted_iota(jnp.int32, e.shape, 1)
            valid = (row * LANES + col) < n_last
            ps_ref[...] = jnp.sum(jnp.where(valid, e, 0.0), axis=0,
                                  keepdims=True)[None]
    else:
        ps_ref[...] = jnp.sum(e, axis=0, keepdims=True)[None]


def _scale_kernel(inv_ref, x_ref, o_ref):
    """Streaming pass B: o = exp(x) * (1/sum).  exp recomputed (EUP, free
    under the HBM bound); no tail masking (padded rows sliced off outside)."""
    e = jnp.exp(x_ref[...].astype(jnp.float32))
    o_ref[...] = (e * inv_ref[...]).astype(o_ref.dtype)


def softmax_global(x, *, tile_rows=None, force_two_pass=False):
    """exp(x) / sum(exp(x)) over ALL elements, matching the PyTorch module."""
    orig_shape = x.shape
    orig_dtype = x.dtype
    n = x.size

    # Flatten to a lane-dense [rows, 128] slab in the SOURCE dtype.
    flat = jnp.reshape(x, (-1,))
    rows = pl.cdiv(n, LANES)
    padded = rows * LANES
    if padded != n:
        # TODO(synk): for lane-ragged n this pad is one extra HBM read+write;
        # NN tensors are virtually always lane-aligned so we keep the simple
        # padded-slab layout rather than a ragged in-kernel tail.
        flat = jnp.pad(flat, (0, padded - n))
    slab = jnp.reshape(flat, (rows, LANES))

    use_fast_path = (not force_two_pass) and (padded * 4 <= FAST_PATH_MAX_F32_BYTES)

    if use_fast_path:
        # ---- VMEM-resident single pass: 2n bytes of HBM traffic. ----
        kernel = functools.partial(_softmax_resident_kernel,
                                   n=n, needs_mask=(padded != n))
        out = pl.pallas_call(
            kernel,
            out_shape=jax.ShapeDtypeStruct((rows, LANES), orig_dtype),
            grid=(1,),
            in_specs=[pl.BlockSpec((rows, LANES), lambda i: (0, 0))],
            out_specs=pl.BlockSpec((rows, LANES), lambda i: (0, 0)),
            compiler_params=pltpu.CompilerParams(
                dimension_semantics=("arbitrary",),
                vmem_limit_bytes=40 * 1024 * 1024),
        )(slab)
    else:
        # ---- Two-pass streaming path: ~3n bytes of HBM traffic. ----
        if tile_rows is None:
            tile_rows = rows if rows <= MAX_TILE_ROWS else MAX_TILE_ROWS
        num_tiles = pl.cdiv(rows, tile_rows)
        tile_elems = tile_rows * LANES
        needs_mask = (num_tiles * tile_elems) != n
        n_last = n - (num_tiles - 1) * tile_elems   # valid elems in last tile

        # Pass A: per-tile partial lane sums.  Independent output block per
        # tile -> grid is "parallel" (both TensorCores on v7x).
        partials = pl.pallas_call(
            functools.partial(_partial_sums_kernel,
                              n_last=n_last, needs_mask=needs_mask),
            out_shape=jax.ShapeDtypeStruct((num_tiles, 1, LANES), jnp.float32),
            grid=(num_tiles,),
            in_specs=[pl.BlockSpec((tile_rows, LANES), lambda t: (t, 0))],
            out_specs=pl.BlockSpec((1, 1, LANES), lambda t: (t, 0, 0)),
            compiler_params=pltpu.CompilerParams(
                dimension_semantics=("parallel",),
                vmem_limit_bytes=48 * 1024 * 1024),
        )(slab)

        # Tiny XLA combine of the per-tile partials (pairwise reduce is also
        # numerically tighter than a sequential running sum); exact reciprocal.
        inv = 1.0 / jnp.sum(partials)
        inv_lanes = jnp.broadcast_to(jnp.reshape(inv, (1, 1)),
                                     (1, LANES)).astype(jnp.float32)

        # Pass B: rescale + write.  (pl.Buffered(3) on the input spec could
        # hide a little DMA jitter; default depth kept for portability.)
        out = pl.pallas_call(
            _scale_kernel,
            out_shape=jax.ShapeDtypeStruct((rows, LANES), orig_dtype),
            grid=(num_tiles,),
            in_specs=[pl.BlockSpec((1, LANES), lambda t: (0, 0)),
                      pl.BlockSpec((tile_rows, LANES), lambda t: (t, 0))],
            out_specs=pl.BlockSpec((tile_rows, LANES), lambda t: (t, 0)),
            compiler_params=pltpu.CompilerParams(
                dimension_semantics=("parallel",),
                vmem_limit_bytes=48 * 1024 * 1024),
        )(inv_lanes, slab)

    result = jnp.reshape(out, (-1,))
    if padded != n:
        result = result[:n]
    return jnp.reshape(result, orig_shape)


if __name__ == "__main__":
    key = jax.random.PRNGKey(0)
    key_a, key_b = jax.random.split(key)

    # NCHW-style input consistent with a typical conv-net tensor.
    x = jax.random.normal(key_a, (2, 4, 16, 16), dtype=jnp.float32)
    y = softmax_global(x)                              # fast VMEM-resident path
    jax.block_until_ready(y)

    ref = jnp.exp(x) / jnp.sum(jnp.exp(x))
    assert y.shape == x.shape and y.dtype == x.dtype
    assert jnp.allclose(y, ref, atol=1e-6, rtol=1e-5), "fast path mismatch"
    assert jnp.allclose(jnp.sum(y), 1.0, atol=1e-5), "global softmax should sum to 1"

    # Also exercise the two-pass streaming path: tiny tiles force multiple
    # grid steps, a ragged (non-lane-aligned) size and the last-tile mask.
    x2 = jax.random.normal(key_b, (3, 5, 7, 11), dtype=jnp.float32)  # 1155 elems
    y2 = softmax_global(x2, tile_rows=8, force_two_pass=True)
    jax.block_until_ready(y2)
    ref2 = jnp.exp(x2) / jnp.sum(jnp.exp(x2))
    assert y2.shape == x2.shape and y2.dtype == x2.dtype
    assert jnp.allclose(y2, ref2, atol=1e-6, rtol=1e-5), "streaming path mismatch"

    print("KERNEL_OK")
</pallas_src>

<mosaic_0001>
module attributes {stable_mosaic.version = 11 : i64} {
  func.func @_softmax_resident_kernel(%arg0: i32, %arg1: memref<16x128xf32, #tpu.memory_space<vmem>>, %arg2: memref<16x128xf32, #tpu.memory_space<vmem>>) attributes {dimension_semantics = [#tpu.dimension_semantics<arbitrary>], iteration_bounds = array<i64: 1>, scalar_prefetch = 0 : i64, scratch_operands = 0 : i64, tpu.core_type = #tpu.core_type<tc>, window_params = [{pipeline_mode = #tpu.pipeline_mode<synchronous>, transform_indices = @transform_0, window_bounds = array<i64: 16, 128>}, {pipeline_mode = #tpu.pipeline_mode<synchronous>, transform_indices = @transform_1, window_bounds = array<i64: 16, 128>}]} {
    %c0 = arith.constant 0 : index
    %c0_0 = arith.constant 0 : index
    %0 = vector.load %arg1[%c0, %c0_0] : memref<16x128xf32, #tpu.memory_space<vmem>>, vector<16x128xf32>
    %1 = math.exp %0 : vector<16x128xf32>
    %2 = vector.shape_cast %1 : vector<16x128xf32> to vector<1x16x128xf32>
    %cst = arith.constant dense<0.000000e+00> : vector<1xf32>
    %3 = vector.multi_reduction <add>, %2, %cst [1, 2] : vector<1x16x128xf32> to vector<1xf32>
    %4 = vector.shape_cast %3 : vector<1xf32> to vector<1x1x1xf32>
    %5 = vector.extract %4[0, 0, 0] : f32 from vector<1x1x1xf32>
    %cst_1 = arith.constant 1.000000e+00 : f32
    %6 = arith.divf %cst_1, %5 : f32
    %7 = vector.broadcast %6 : f32 to vector<16x128xf32>
    %8 = arith.mulf %1, %7 : vector<16x128xf32>
    %c0_2 = arith.constant 0 : index
    %c0_3 = arith.constant 0 : index
    %9 = vector.load %arg2[%c0_2, %c0_3] : memref<16x128xf32, #tpu.memory_space<vmem>>, vector<16x128xf32>
    tpu.vector_store %arg2[%c0_2, %c0_3], %8 {strides = array<i32>} : memref<16x128xf32, #tpu.memory_space<vmem>>, vector<16x128xf32>,
    return
  }
  func.func @transform_0(%arg0: i32) -> (i32, i32) {
    %c0_i32 = arith.constant 0 : i32
    %c0_i32_0 = arith.constant 0 : i32
    %c0_i32_1 = arith.constant 0 : i32
    return %c0_i32, %c0_i32_0 : i32, i32
  }
  func.func @transform_1(%arg0: i32) -> (i32, i32) {
    %c0_i32 = arith.constant 0 : i32
    %c0_i32_0 = arith.constant 0 : i32
    %c0_i32_1 = arith.constant 0 : i32
    return %c0_i32, %c0_i32_0 : i32, i32
  }
}

</mosaic_0001>

<llo_original>
// kernel: tpu_custom_call.1
$region0: #{tpu_custom_call.1}
  #allocation0 [shape = 'u32[]', space=smem, size = 0x4, offset = 0x4, fixed_abs, tag = 'smem constant byte address 0x4 - core index']
  #allocation1 [shape = 'u32[144,128]{1,0:T(1,128)}', space=vmem, size = 0x12000, scoped, tag = 'internal scratch']
  %s0 = inlined_call_operand.hbm [shape: f32[16,128], index: 0, kind: input, shape index: {}]
  %s1 = inlined_call_operand.hbm [shape: f32[16,128], index: 1, kind: output, shape index: {}]
  %s2 = sld [smem:[#allocation0]]
  $region18: #{tpu_custom_call.1} parent=0
    _
  %s4 = ssub.s32 1, %s2
  %s5 = scalar_select 0, %s4, %s2
  $region1: #{tpu_custom_call.1} parent=0
    #allocation2 [shape = 'u8[8192]{0}', space=vmem, size = 0x2000, scoped, tag = 'input window, operand 0, single buffered']
    #allocation3 [shape = 's32[1]{0}', space=sflag, size = 0x4, scoped, tag = 'scoped memory for tpu_custom_call.1']
    #allocation4 [shape = 's32[1]{0}', space=sflag, size = 0x4, scoped, tag = 'scoped memory for tpu_custom_call.1']
    #allocation5 [shape = 'u8[8192]{0}', space=vmem, size = 0x2000, scoped, tag = 'output window, operand 0, single buffered']
    %6 = vsyncpa [#allocation3], 0
    %7 = vsyncpa [#allocation4], 0
    // Predicated region
    $region2: #{tpu_custom_call.1} parent=1 // pred_check
      _
    $region3: #{tpu_custom_call.1} parent=1 // pred_check_branch
      %9 = sbr.rel (0) target = $region5
    $region4: #{tpu_custom_call.1} parent=1 // pred_region
      %s11 = ssub.s32 256, 256
      %12 = vsyncadd [#allocation3], %s11
      %s13 = sshll.u32 [#allocation2], 4
      %s14 = int_to_ptr.vmem [resolvable:$true] %s13
      %19 = dma.hbm_to_vmem [thread:$0]  %s0, 256, %s14, [#allocation3], 128, 128, 8
    $region5: #{tpu_custom_call.1} parent=1 // pred_fallthru
      _
    // Predicated region
    $region6: #{tpu_custom_call.1} parent=1 // pred_check
      _
    $region7: #{tpu_custom_call.1} parent=1 // pred_check_branch
      %21 = sbr.rel (0) target = $region9
    $region8: #{tpu_custom_call.1} parent=1 // pred_region
      %22 = dma.done [#allocation3], 256
    $region9: #{tpu_custom_call.1} parent=1 // pred_fallthru
      _
    %v23 = vld [vmem:[#allocation2] sm:$0xff]
    %v24 = vld [vmem:[#allocation2 + $0x8] sm:$0xff]
    %v25 = vmul.f32 %v23, 1.442695
    %v26 = vpow.pop %v25
    %v27 = vmul.f32 %v24, 1.442695
    %v28 = vpow.pop %v27
    %v29 = vadd.f32 %v26, %v28
    %30 = vadd.xlane.f32.xlu0 %v29
    %v31 = vpop.xlane.xlu0 %30
    %v32 = vrot.slane %v31, 4
    %v33 = vadd.f32 %v31, %v32
    %v34 = vrot.slane %v33, 2
    %v35 = vadd.f32 %v33, %v34
    %v36 = vrot.slane %v35, 1
    %v37 = vadd.f32 %v35, %v36
    %s38 = vtos %v37
    %v39 = vstv %s38
    %v40 = vrcp.pop %v39
    %s41 = vtos %v40
    %v42 = vstv %s41
    %v43 = vmul.f32 %v26, %v42
    %v44 = vmul.f32 %v28, %v42
    %45 = vst [vmem:[#allocation5] sm:$0xff] %v43
    %46 = vst [vmem:[#allocation5 + $0x8] sm:$0xff] %v44
    // Predicated region
    $region10: #{tpu_custom_call.1} parent=1 // pred_check
      _
    $region11: #{tpu_custom_call.1} parent=1 // pred_check_branch
      %48 = sbr.rel (0) target = $region13
    $region12: #{tpu_custom_call.1} parent=1 // pred_region
      %s50 = ssub.s32 256, 256
      %51 = vsyncadd [#allocation4], %s50
      %s52 = sshll.u32 [#allocation5], 4
      %s53 = int_to_ptr.vmem [resolvable:$true] %s52
      %58 = dma.vmem_to_hbm [thread:$0]  %s53, 256, %s1, [#allocation4], 128, 128, 8
    $region13: #{tpu_custom_call.1} parent=1 // pred_fallthru
      _
    // Predicated region
    $region14: #{tpu_custom_call.1} parent=1 // pred_check
      _
    $region15: #{tpu_custom_call.1} parent=1 // pred_check_branch
      %60 = sbr.rel (0) target = $region17
    $region16: #{tpu_custom_call.1} parent=1 // pred_region
      %61 = dma.done [#allocation4], 256
    $region17: #{tpu_custom_call.1} parent=1 // pred_fallthru
      _
    %62 = vsyncpa [#allocation3], 1
    %63 = vsyncpa [#allocation4], 1

</llo_original>
